<compile_context>
chip_gen: v7x
topology: tpu7x:2x2x1
jax: 0.10.0
libtpu: 0.0.40
codegen_flags: <defaults>
</compile_context>

<pallas_src>
import functools

import jax
import jax.numpy as jnp
from jax.experimental import pallas as pl
from jax.experimental.pallas import tpu as pltpu


# ---------------------------------------------------------------------------
# Kernels
# ---------------------------------------------------------------------------

def _fused_bn_kernel(x_ref, w_ref, b_ref, o_ref, *, eps, inv_m):
    """Single-pass BN: x resident in VMEM, 1 HBM read + 1 HBM write."""
    x = x_ref[...].astype(jnp.float32)                     # (N, C, L)
    s = jnp.sum(x, axis=2, keepdims=True)                  # (N, C, 1) lane reduce
    sq = jnp.sum(x * x, axis=2, keepdims=True)             # (N, C, 1)
    s = jnp.sum(s, axis=0, keepdims=True)                  # (1, C, 1)
    sq = jnp.sum(sq, axis=0, keepdims=True)                # (1, C, 1)
    mean = s * inv_m
    var = jnp.maximum(sq * inv_m - mean * mean, 0.0)       # clamp cancellation
    inv_std = jax.lax.rsqrt(var + eps)
    scale = w_ref[...] * inv_std                           # (1, C, 1)
    shift = b_ref[...] - mean * scale                      # (1, C, 1)
    o_ref[...] = (x * scale + shift).astype(o_ref.dtype)


def _stats_kernel(x_ref, sum_ref, sq_ref):
    """Per-sample partial sum / sum-of-squares, accumulated over lane tiles.

    Accumulation happens directly in the (n)-resident output block, so the
    N grid axis can be marked "parallel" (no shared scratch, no cross-core
    race); the lane-tile axis is the innermost reduction ("arbitrary").
    """
    @pl.when(pl.program_id(1) == 0)
    def _init():
        sum_ref[...] = jnp.zeros_like(sum_ref)
        sq_ref[...] = jnp.zeros_like(sq_ref)

    x = x_ref[...].astype(jnp.float32)                     # (1, C, TL)
    sum_ref[...] += jnp.sum(x, axis=2, keepdims=True)      # (1, C, 1)
    sq_ref[...] += jnp.sum(x * x, axis=2, keepdims=True)   # (1, C, 1)


def _norm_kernel(x_ref, scale_ref, shift_ref, o_ref):
    """y = x * scale + shift (scale/shift pre-shaped (1,C,1), pre-cast)."""
    x = x_ref[...].astype(scale_ref.dtype)
    o_ref[...] = (x * scale_ref[...] + shift_ref[...]).astype(o_ref.dtype)


# ---------------------------------------------------------------------------
# Wrapper
# ---------------------------------------------------------------------------

def _vmem_capacity_bytes():
    """Physical VMEM (v5e/v6e: 128 MiB, v7x: 64 MiB); conservative fallback."""
    try:
        return int(pltpu.get_tpu_info().vmem_capacity_bytes)
    except Exception:
        return 64 * 1024 * 1024


def _plan_lane_tiling(L, C, tile_budget_bytes):
    """Pick lane tile TL (multiple of 128, C*TL*4 <= budget) and padded Lp."""
    max_tl = max(128, (tile_budget_bytes // (max(C, 1) * 4)) // 128 * 128)
    num_lt = max(1, -(-L // max_tl))          # ceil(L / max_tl)
    tl = -(-L // num_lt)                      # balance padding across tiles
    tl = ((tl + 127) // 128) * 128            # lane-dense: multiple of 128
    return tl, num_lt * tl, num_lt


def meta_batch_norm_2d(x, weight, bias, eps=1e-5):
    """x: (N, C, H, W). weight, bias: (C,). Returns (N, C, H, W)."""
    N, C, H, W = x.shape
    L = H * W
    M = N * L
    inv_m = 1.0 / float(M)

    x3 = x.reshape(N, C, L)                                # free reshape (NCHW)
    w3 = weight.astype(jnp.float32).reshape(1, C, 1)
    b3 = bias.astype(jnp.float32).reshape(1, C, 1)

    phys_vmem = _vmem_capacity_bytes()
    big_vmem = phys_vmem >= 100 * 1024 * 1024

    # ---- Fused single-pass path when x (plus temps/double-buffers) fits ----
    # Rough VMEM estimate: double-buffered in/out blocks + f32 temporaries.
    est_fused = N * C * L * (4 * x.dtype.itemsize + 12) + (2 << 20)
    if est_fused <= phys_vmem // 2:
        fused_limit = min(int(phys_vmem * 3 // 4),
                          max(48 << 20, est_fused + (8 << 20)))
        y3 = pl.pallas_call(
            functools.partial(_fused_bn_kernel, eps=float(eps), inv_m=inv_m),
            out_shape=jax.ShapeDtypeStruct((N, C, L), x.dtype),
            grid=(1,),
            in_specs=[
                pl.BlockSpec((N, C, L), lambda i: (0, 0, 0)),
                pl.BlockSpec((1, C, 1), lambda i: (0, 0, 0)),
                pl.BlockSpec((1, C, 1), lambda i: (0, 0, 0)),
            ],
            out_specs=pl.BlockSpec((N, C, L), lambda i: (0, 0, 0)),
            compiler_params=pltpu.CompilerParams(
                dimension_semantics=("arbitrary",),
                vmem_limit_bytes=fused_limit),
        )(x3, w3, b3)
        return y3.reshape(N, C, H, W)

    # ---- Streaming two-pass path (large x) ----
    # Bigger tiles on 128-MiB-VMEM chips (v5e/v6e); tighter on v7x (64 MiB).
    tile_budget = (8 if big_vmem else 4) * 1024 * 1024
    vmem_limit = (64 if big_vmem else 32) * 1024 * 1024
    TL, Lp, num_lt = _plan_lane_tiling(L, C, tile_budget)
    if Lp != L:
        # Zero-pad lanes to a multiple of TL: zeros don't affect sum/sumsq
        # (inv_m already uses the true element count); padding sliced off below.
        x3 = jnp.pad(x3, ((0, 0), (0, 0), (0, Lp - L)))

    # Pass 1: per-sample partial statistics.
    sums, sqs = pl.pallas_call(
        _stats_kernel,
        out_shape=(jax.ShapeDtypeStruct((N, C, 1), jnp.float32),
                   jax.ShapeDtypeStruct((N, C, 1), jnp.float32)),
        grid=(N, num_lt),
        in_specs=[pl.BlockSpec((1, C, TL), lambda n, l: (n, 0, l))],
        out_specs=(pl.BlockSpec((1, C, 1), lambda n, l: (n, 0, 0)),
                   pl.BlockSpec((1, C, 1), lambda n, l: (n, 0, 0))),
        compiler_params=pltpu.CompilerParams(
            dimension_semantics=("parallel", "arbitrary"),
            vmem_limit_bytes=vmem_limit),
    )(x3)

    # Tiny finalize in plain JAX (N*C elements).
    total_s = jnp.sum(sums, axis=0)                        # (C, 1)
    total_sq = jnp.sum(sqs, axis=0)                        # (C, 1)
    mean = total_s * inv_m
    var = jnp.maximum(total_sq * inv_m - mean * mean, 0.0)
    inv_std = jax.lax.rsqrt(var + float(eps))
    scale = w3[0] * inv_std                                # (C, 1)
    shift = b3[0] - mean * scale                           # (C, 1)

    # Native low-precision math for bf16/f16 inputs; f32 otherwise.
    compute_dtype = x.dtype if x.dtype in (jnp.bfloat16, jnp.float16) \
        else jnp.float32
    scale3 = scale.reshape(1, C, 1).astype(compute_dtype)
    shift3 = shift.reshape(1, C, 1).astype(compute_dtype)

    # Pass 2: normalize (fully parallel over N and lane tiles).
    y3 = pl.pallas_call(
        _norm_kernel,
        out_shape=jax.ShapeDtypeStruct((N, C, Lp), x.dtype),
        grid=(N, num_lt),
        in_specs=[
            pl.BlockSpec((1, C, TL), lambda n, l: (n, 0, l)),
            pl.BlockSpec((1, C, 1), lambda n, l: (0, 0, 0)),
            pl.BlockSpec((1, C, 1), lambda n, l: (0, 0, 0)),
        ],
        out_specs=pl.BlockSpec((1, C, TL), lambda n, l: (n, 0, l)),
        compiler_params=pltpu.CompilerParams(
            dimension_semantics=("parallel", "parallel"),
            vmem_limit_bytes=vmem_limit),
    )(x3, scale3, shift3)

    if Lp != L:
        y3 = y3[:, :, :L]
    return y3.reshape(N, C, H, W)


def _reference(x, weight, bias, eps=1e-5):
    # Pure-JAX reference for training-mode batch norm (biased variance).
    mean = jnp.mean(x, axis=(0, 2, 3), keepdims=True)
    var = jnp.mean((x - mean) ** 2, axis=(0, 2, 3), keepdims=True)
    w = weight.reshape(1, -1, 1, 1)
    b = bias.reshape(1, -1, 1, 1)
    return (x - mean) / jnp.sqrt(var + eps) * w + b


if __name__ == "__main__":
    key = jax.random.PRNGKey(0)
    kx, kw, kb = jax.random.split(key, 3)

    N, C, H, W = 2, 4, 16, 16       # num_features = C = 4
    x = jax.random.normal(kx, (N, C, H, W), dtype=jnp.float32)
    # MetaBatchNorm2d affine parameters (shape (C,)); deterministic init.
    weight = 1.0 + 0.1 * jax.random.normal(kw, (C,), dtype=jnp.float32)
    bias = 0.1 * jax.random.normal(kb, (C,), dtype=jnp.float32)
    eps = 1e-5

    y = meta_batch_norm_2d(x, weight, bias, eps)
    y = jax.block_until_ready(y)

    y_ref = _reference(x, weight, bias, eps)
    assert y.shape == (N, C, H, W)
    assert jnp.allclose(y, y_ref, atol=1e-4, rtol=1e-4), "mismatch vs reference"

    print("KERNEL_OK")
</pallas_src>

<mosaic_0001>
module attributes {stable_mosaic.version = 11 : i64} {
  func.func @_fused_bn_kernel(%arg0: i32, %arg1: memref<2x4x256xf32, #tpu.memory_space<vmem>>, %arg2: memref<1x4x1xf32, #tpu.memory_space<vmem>>, %arg3: memref<1x4x1xf32, #tpu.memory_space<vmem>>, %arg4: memref<2x4x256xf32, #tpu.memory_space<vmem>>) attributes {dimension_semantics = [#tpu.dimension_semantics<arbitrary>], iteration_bounds = array<i64: 1>, scalar_prefetch = 0 : i64, scratch_operands = 0 : i64, tpu.core_type = #tpu.core_type<tc>, window_params = [{pipeline_mode = #tpu.pipeline_mode<synchronous>, transform_indices = @transform_0, window_bounds = array<i64: 2, 4, 256>}, {pipeline_mode = #tpu.pipeline_mode<synchronous>, transform_indices = @transform_1, window_bounds = array<i64: 1, 4, 1>}, {pipeline_mode = #tpu.pipeline_mode<synchronous>, transform_indices = @transform_2, window_bounds = array<i64: 1, 4, 1>}, {pipeline_mode = #tpu.pipeline_mode<synchronous>, transform_indices = @transform_3, window_bounds = array<i64: 2, 4, 256>}]} {
    %c0 = arith.constant 0 : index
    %c0_0 = arith.constant 0 : index
    %c0_1 = arith.constant 0 : index
    %0 = vector.load %arg1[%c0, %c0_0, %c0_1] : memref<2x4x256xf32, #tpu.memory_space<vmem>>, vector<2x4x256xf32>
    %cst = arith.constant dense<0.000000e+00> : vector<2x4xf32>
    %1 = vector.multi_reduction <add>, %0, %cst [2] : vector<2x4x256xf32> to vector<2x4xf32>
    %2 = vector.shape_cast %1 : vector<2x4xf32> to vector<2x4x1xf32>
    %3 = arith.mulf %0, %0 : vector<2x4x256xf32>
    %cst_2 = arith.constant dense<0.000000e+00> : vector<2x4xf32>
    %4 = vector.multi_reduction <add>, %3, %cst_2 [2] : vector<2x4x256xf32> to vector<2x4xf32>
    %5 = vector.shape_cast %4 : vector<2x4xf32> to vector<2x4x1xf32>
    %cst_3 = arith.constant dense<0.000000e+00> : vector<4x1xf32>
    %6 = vector.multi_reduction <add>, %2, %cst_3 [0] : vector<2x4x1xf32> to vector<4x1xf32>
    %7 = vector.shape_cast %6 : vector<4x1xf32> to vector<1x4x1xf32>
    %cst_4 = arith.constant dense<0.000000e+00> : vector<4x1xf32>
    %8 = vector.multi_reduction <add>, %5, %cst_4 [0] : vector<2x4x1xf32> to vector<4x1xf32>
    %9 = vector.shape_cast %8 : vector<4x1xf32> to vector<1x4x1xf32>
    %cst_5 = arith.constant 0.001953125 : f32
    %10 = vector.broadcast %cst_5 : f32 to vector<1x4x1xf32>
    %11 = arith.mulf %7, %10 : vector<1x4x1xf32>
    %cst_6 = arith.constant 0.001953125 : f32
    %12 = vector.broadcast %cst_6 : f32 to vector<1x4x1xf32>
    %13 = arith.mulf %9, %12 : vector<1x4x1xf32>
    %14 = arith.mulf %11, %11 : vector<1x4x1xf32>
    %15 = arith.subf %13, %14 : vector<1x4x1xf32>
    %cst_7 = arith.constant 0.000000e+00 : f32
    %16 = vector.broadcast %cst_7 : f32 to vector<1x4x1xf32>
    %17 = arith.maximumf %15, %16 : vector<1x4x1xf32>
    %cst_8 = arith.constant 9.99999974E-6 : f32
    %18 = vector.broadcast %cst_8 : f32 to vector<1x4x1xf32>
    %19 = arith.addf %17, %18 : vector<1x4x1xf32>
    %20 = math.rsqrt %19 : vector<1x4x1xf32>
    %c0_9 = arith.constant 0 : index
    %c0_10 = arith.constant 0 : index
    %c0_11 = arith.constant 0 : index
    %21 = vector.load %arg2[%c0_9, %c0_10, %c0_11] : memref<1x4x1xf32, #tpu.memory_space<vmem>>, vector<1x4x1xf32>
    %22 = arith.mulf %21, %20 : vector<1x4x1xf32>
    %c0_12 = arith.constant 0 : index
    %c0_13 = arith.constant 0 : index
    %c0_14 = arith.constant 0 : index
    %23 = vector.load %arg3[%c0_12, %c0_13, %c0_14] : memref<1x4x1xf32, #tpu.memory_space<vmem>>, vector<1x4x1xf32>
    %24 = arith.mulf %11, %22 : vector<1x4x1xf32>
    %25 = arith.subf %23, %24 : vector<1x4x1xf32>
    %26 = vector.broadcast %22 : vector<1x4x1xf32> to vector<2x4x256xf32>
    %27 = arith.mulf %0, %26 : vector<2x4x256xf32>
    %28 = vector.broadcast %25 : vector<1x4x1xf32> to vector<2x4x256xf32>
    %29 = arith.addf %27, %28 : vector<2x4x256xf32>
    %c0_15 = arith.constant 0 : index
    %c0_16 = arith.constant 0 : index
    %c0_17 = arith.constant 0 : index
    %30 = vector.load %arg4[%c0_15, %c0_16, %c0_17] : memref<2x4x256xf32, #tpu.memory_space<vmem>>, vector<2x4x256xf32>
    tpu.vector_store %arg4[%c0_15, %c0_16, %c0_17], %29 {strides = array<i32>} : memref<2x4x256xf32, #tpu.memory_space<vmem>>, vector<2x4x256xf32>,
    return
  }
  func.func @transform_0(%arg0: i32) -> (i32, i32, i32) {
    %c0_i32 = arith.constant 0 : i32
    %c0_i32_0 = arith.constant 0 : i32
    %c0_i32_1 = arith.constant 0 : i32
    %c0_i32_2 = arith.constant 0 : i32
    return %c0_i32, %c0_i32_0, %c0_i32_1 : i32, i32, i32
  }
  func.func @transform_1(%arg0: i32) -> (i32, i32, i32) {
    %c0_i32 = arith.constant 0 : i32
    %c0_i32_0 = arith.constant 0 : i32
    %c0_i32_1 = arith.constant 0 : i32
    %c0_i32_2 = arith.constant 0 : i32
    return %c0_i32, %c0_i32_0, %c0_i32_1 : i32, i32, i32
  }
  func.func @transform_2(%arg0: i32) -> (i32, i32, i32) {
    %c0_i32 = arith.constant 0 : i32
    %c0_i32_0 = arith.constant 0 : i32
    %c0_i32_1 = arith.constant 0 : i32
    %c0_i32_2 = arith.constant 0 : i32
    return %c0_i32, %c0_i32_0, %c0_i32_1 : i32, i32, i32
  }
  func.func @transform_3(%arg0: i32) -> (i32, i32, i32) {
    %c0_i32 = arith.constant 0 : i32
    %c0_i32_0 = arith.constant 0 : i32
    %c0_i32_1 = arith.constant 0 : i32
    %c0_i32_2 = arith.constant 0 : i32
    return %c0_i32, %c0_i32_0, %c0_i32_1 : i32, i32, i32
  }
}

</mosaic_0001>

<llo_original>
// kernel: tpu_custom_call.1
$region0: #{tpu_custom_call.1}
  #allocation0 [shape = 'u32[]', space=smem, size = 0x4, offset = 0x4, fixed_abs, tag = 'smem constant byte address 0x4 - core index']
  #allocation1 [shape = 'u32[144,128]{1,0:T(1,128)}', space=vmem, size = 0x12000, scoped, tag = 'internal scratch']
  %s0 = inlined_call_operand.hbm [shape: f32[2,4,256], index: 0, kind: input, shape index: {}]
  %s1 = inlined_call_operand.vmem [shape: f32[1,4,1], index: 1, kind: input, shape index: {}]
  %s2 = inlined_call_operand.vmem [shape: f32[1,4,1], index: 2, kind: input, shape index: {}]
  %s3 = inlined_call_operand.hbm [shape: f32[2,4,256], index: 3, kind: output, shape index: {}]
  %s4 = sld [smem:[#allocation0]]
  $region26: #{tpu_custom_call.1} parent=0
    _
  %s6 = ssub.s32 1, %s4
  %s7 = scalar_select 0, %s6, %s4
  $region1: #{tpu_custom_call.1} parent=0
    #allocation2 [shape = 'u8[8192]{0}', space=vmem, size = 0x2000, scoped, tag = 'input window, operand 0, single buffered']
    #allocation3 [shape = 's32[1]{0}', space=sflag, size = 0x4, scoped, tag = 'scoped memory for tpu_custom_call.1']
    #allocation4 [shape = 's32[1]{0}', space=sflag, size = 0x4, scoped, tag = 'scoped memory for tpu_custom_call.1']
    #allocation5 [shape = 'u8[8192]{0}', space=vmem, size = 0x2000, scoped, tag = 'output window, operand 0, single buffered']
    %8 = vsyncpa [#allocation3], 0
    %9 = vsyncpa [#allocation4], 0
    // Predicated region
    $region2: #{tpu_custom_call.1} parent=1 // pred_check
      _
    $region3: #{tpu_custom_call.1} parent=1 // pred_check_branch
      %11 = sbr.rel (0) target = $region5
    $region4: #{tpu_custom_call.1} parent=1 // pred_region
      %s13 = ssub.s32 256, 256
      %14 = vsyncadd [#allocation3], %s13
      %s15 = sshll.u32 [#allocation2], 4
      %s16 = int_to_ptr.vmem [resolvable:$true] %s15
      %21 = dma.hbm_to_vmem [thread:$0]  %s0, 256, %s16, [#allocation3], 128, 128, 8
    $region5: #{tpu_custom_call.1} parent=1 // pred_fallthru
      _
    // Predicated region
    $region6: #{tpu_custom_call.1} parent=1 // pred_check
      _
    $region7: #{tpu_custom_call.1} parent=1 // pred_check_branch
      %23 = sbr.rel (0) target = $region9
    $region8: #{tpu_custom_call.1} parent=1 // pred_region
      _
    $region9: #{tpu_custom_call.1} parent=1 // pred_fallthru
      _
    // Predicated region
    $region10: #{tpu_custom_call.1} parent=1 // pred_check
      _
    $region11: #{tpu_custom_call.1} parent=1 // pred_check_branch
      %25 = sbr.rel (0) target = $region13
    $region12: #{tpu_custom_call.1} parent=1 // pred_region
      _
    $region13: #{tpu_custom_call.1} parent=1 // pred_fallthru
      _
    // Predicated region
    $region14: #{tpu_custom_call.1} parent=1 // pred_check
      _
    $region15: #{tpu_custom_call.1} parent=1 // pred_check_branch
      %27 = sbr.rel (0) target = $region17
    $region16: #{tpu_custom_call.1} parent=1 // pred_region
      %28 = dma.done [#allocation3], 256
    $region17: #{tpu_custom_call.1} parent=1 // pred_fallthru
      _
    %v29 = vld [vmem:[#allocation2] sm:$0xff]
    %v30 = vld [vmem:[#allocation2 + $0x8] sm:$0xff]
    %v33 = vcombine.high %v29, %v29
    %v34 = vcombine.high %v30, %v30
    %vm37 = vcmask 1043456
    %v38 = vsel %vm37, %v29, 0.0
    %v39 = vsel %vm37, %v33, 0.0
    %v40 = vadd.f32 %v38, %v39
    %41 = vadd.xlane.f32.xlu0 %v40
    %v42 = vpop.xlane.xlu0 %41
    %v43 = vsel %vm37, %v30, 0.0
    %v44 = vsel %vm37, %v34, 0.0
    %v45 = vadd.f32 %v43, %v44
    %46 = vadd.xlane.f32.xlu0 %v45
    %v47 = vpop.xlane.xlu0 %46
    %v48 = vmul.f32 %v29, %v29
    %v49 = vmul.f32 %v30, %v30
    %v52 = vcombine.high %v48, %v48
    %v53 = vcombine.high %v49, %v49
    %v56 = vsel %vm37, %v48, 0.0
    %v57 = vsel %vm37, %v52, 0.0
    %v58 = vadd.f32 %v56, %v57
    %59 = vadd.xlane.f32.xlu0 %v58
    %v60 = vpop.xlane.xlu0 %59
    %v61 = vsel %vm37, %v49, 0.0
    %v62 = vsel %vm37, %v53, 0.0
    %v63 = vadd.f32 %v61, %v62
    %64 = vadd.xlane.f32.xlu0 %v63
    %v65 = vpop.xlane.xlu0 %64
    %v66 = vsel %vm37, %v42, 0.0
    %v67 = vsel %vm37, %v47, 0.0
    %v68 = vadd.f32 %v66, %v67
    %v69 = vsel %vm37, %v60, 0.0
    %v70 = vsel %vm37, %v65, 0.0
    %v71 = vadd.f32 %v69, %v70
    %v72 = vmul.f32 %v68, 0.001953125
    %v73 = vmul.f32 %v71, 0.001953125
    %v74 = vmul.f32 %v72, %v72
    %v75 = vsub.f32 %v73, %v74
    %v76 = vmax.f32 %v75, 0.0
    %v77 = vadd.f32 %v76, 1e-05
    %v78 = vrsqrt.pop %v77
    %v79 = vld [vmem:[%s1] sm:$0xf]
    %v80 = vmul.f32 %v79, %v78
    %v81 = vld [vmem:[%s2] sm:$0xf]
    %v82 = vmul.f32 %v72, %v80
    %v83 = vsub.f32 %v81, %v82
    %85 = vset.pattern.permute.xlu0 0
    %86 = vperm.xlu0 %85, %v80
    %v87 = vpop.permute.xlu0 %86
    %v89 = vunpack.c.l.s4 839922192
    %v90 = vunpack.c.0.s8 %v89
    %v91 = vlaneseq
    %v92 = vshrl.u32 %v91, 7
    %v93 = vsub.s32 %v90, %v92
    %v94 = vrot.slane %v87, %v93
    %v96 = vmul.f32 %v29, %v94
    %v97 = vmul.f32 %v30, %v94
    %99 = vset.pattern.permute.xlu0 0
    %100 = vperm.xlu0 %99, %v83
    %v101 = vpop.permute.xlu0 %100
    %v103 = vunpack.c.l.s4 839922192
    %v104 = vunpack.c.0.s8 %v103
    %v105 = vlaneseq
    %v106 = vshrl.u32 %v105, 7
    %v107 = vsub.s32 %v104, %v106
    %v108 = vrot.slane %v101, %v107
    %v110 = vadd.f32 %v96, %v108
    %v111 = vadd.f32 %v97, %v108
    %112 = vst [vmem:[#allocation5] sm:$0xff] %v110
    %113 = vst [vmem:[#allocation5 + $0x8] sm:$0xff] %v111
    // Predicated region
    $region18: #{tpu_custom_call.1} parent=1 // pred_check
      _
    $region19: #{tpu_custom_call.1} parent=1 // pred_check_branch
      %115 = sbr.rel (0) target = $region21
    $region20: #{tpu_custom_call.1} parent=1 // pred_region
      %s117 = ssub.s32 256, 256
      %118 = vsyncadd [#allocation4], %s117
      %s119 = sshll.u32 [#allocation5], 4
      %s120 = int_to_ptr.vmem [resolvable:$true] %s119
      %125 = dma.vmem_to_hbm [thread:$0]  %s120, 256, %s3, [#allocation4], 128, 128, 8
    $region21: #{tpu_custom_call.1} parent=1 // pred_fallthru
      _
    // Predicated region
    $region22: #{tpu_custom_call.1} parent=1 // pred_check
      _
    $region23: #{tpu_custom_call.1} parent=1 // pred_check_branch
      %127 = sbr.rel (0) target = $region25
    $region24: #{tpu_custom_call.1} parent=1 // pred_region
      %128 = dma.done [#allocation4], 256
    $region25: #{tpu_custom_call.1} parent=1 // pred_fallthru
      _
    %129 = vsyncpa [#allocation3], 1
    %130 = vsyncpa [#allocation4], 1

</llo_original>
